<compile_context>
chip_gen: v6e
topology: v6e:2x2x1
jax: 0.10.0
libtpu: 0.0.40
codegen_flags: <defaults>
</compile_context>

<pallas_src>
import functools

import jax
import jax.numpy as jnp
from jax.experimental import pallas as pl
from jax.experimental.pallas import tpu as pltpu

LEAKY_SLOPE = 0.01   # nn.LeakyReLU default negative_slope
BN_EPS = 1e-5        # nn.BatchNorm1d default eps
NUM_PHASES = 3       # phase 0: BN1 stats; phase 1: BN2 stats; phase 2: output


def _round_up(n, m):
    return -(-n // m) * m


def _mlp_kernel(x_ref, w1_ref, w2_ref, pp_ref, out_ref, s1_ref, s2_ref, *,
                d1, d2, n_valid, tile_b, dot_dtype, needs_mask):
    """One (phase, batch-tile) grid step.

    Grid = (NUM_PHASES, n_tiles); the phase axis is the outer (slow) axis so every batch
    tile of a phase runs before the next phase starts -> BN statistics cover the full batch
    even though the batch is streamed in tiles:

      phase 0: h1 = x @ w1                        -> accumulate [sum; sum_sq](h1) into s1_ref
      phase 1: finalize BN1 ([scale; shift] written back into s1_ref), recompute h1, apply
               BN1+LeakyReLU, h2 = a1 @ w2        -> accumulate [sum; sum_sq](h2) into s2_ref
      phase 2: finalize BN2, recompute h1/a1/h2, apply BN2+LeakyReLU, out = a2 . w3 + b3

    pp_ref is a packed (6, lanes) per-feature parameter table (f32):
      row 0: gamma1[:d1]  row 1: beta1[:d1]  row 2: gamma2[:d2]  row 3: beta2[:d2]
      row 4: b3 (lane 0)  row 5: w3^T[:d2]
    Linear biases b1/b2 are omitted: train-mode BN subtracts the batch mean, so a constant
    per-feature bias added before BN cancels exactly.
    """
    p = pl.program_id(0)
    t = pl.program_id(1)
    inv_n = jnp.float32(1.0 / n_valid)

    def mxu_dot(a, w_ref):
        # MXU matmul; operands in dot_dtype (bf16 recommended at realistic sizes), f32 accum.
        return jnp.dot(a.astype(dot_dtype), w_ref[...], preferred_element_type=jnp.float32)

    def col_sums(h):
        # TODO(synk): if bundle profiling shows the VALU/XLU slot binding (likely with bf16
        # dots and small hidden dims), move these batch reductions onto the MXU via a
        # ones(1, tile_b) matmul against [h, h*h].
        return jnp.concatenate(
            [jnp.sum(h, axis=0, keepdims=True),
             jnp.sum(h * h, axis=0, keepdims=True)], axis=0)

    def finalize(s_ref, g, be):
        # Convert accumulated [sum; sum_sq] into fused BN [scale; shift], in place (f32).
        s = s_ref[...]
        mean = s[0:1, :] * inv_n
        m2 = s[1:2, :] * inv_n
        # One-pass variance E[h^2]-E[h]^2 (clamped).  Fine here because the pre-BN means are
        # near zero (biases elided); switch to centered partial sums if tolerances tighten.
        var = jnp.maximum(m2 - mean * mean, 0.0)
        scale = g * jax.lax.rsqrt(var + BN_EPS)
        shift = be - mean * scale
        s_ref[...] = jnp.concatenate([scale, shift], axis=0)

    def bn_leaky(h, s_ref):
        h = h * s_ref[0:1, :] + s_ref[1:2, :]
        return jnp.where(h > 0, h, LEAKY_SLOPE * h)   # Dropout(p=0) == identity

    def layer1_act():
        a1 = bn_leaky(mxu_dot(x_ref[...], w1_ref), s1_ref)
        if needs_mask:
            # Zero padded batch rows so they don't pollute the next layer's statistics.
            rows = t * tile_b + jax.lax.broadcasted_iota(jnp.int32, (tile_b, 1), 0)
            a1 = jnp.where(rows < n_valid, a1, 0.0)
        return a1

    # ---- per-phase init / finalization of the BN statistics scratch ----------------------
    @pl.when(jnp.logical_and(p == 0, t == 0))
    def _():
        s1_ref[...] = jnp.zeros_like(s1_ref)

    @pl.when(jnp.logical_and(p == 1, t == 0))
    def _():
        finalize(s1_ref, pp_ref[0:1, :d1], pp_ref[1:2, :d1])
        s2_ref[...] = jnp.zeros_like(s2_ref)

    @pl.when(jnp.logical_and(p == 2, t == 0))
    def _():
        finalize(s2_ref, pp_ref[2:3, :d2], pp_ref[3:4, :d2])

    # ---- per-phase tile work --------------------------------------------------------------
    @pl.when(p == 0)
    def _():
        h1 = mxu_dot(x_ref[...], w1_ref)   # padded x rows are exactly 0 (bias elided)
        s1_ref[...] += col_sums(h1)

    @pl.when(p == 1)
    def _():
        h2 = mxu_dot(layer1_act(), w2_ref)
        s2_ref[...] += col_sums(h2)

    @pl.when(p == 2)
    def _():
        a2 = bn_leaky(mxu_dot(layer1_act(), w2_ref), s2_ref)
        # Final Linear(d2, 1): elementwise multiply + lane reduction; (tile, 1) store keeps
        # output HBM traffic ~128x below a padded 128-lane slab.
        out_ref[...] = jnp.sum(a2 * pp_ref[5:6, :d2], axis=1, keepdims=True) + pp_ref[4:5, 0:1]

    # Keep the per-step output writeback deterministic in the stat-only phases (the phase-2
    # pass overwrites the same HBM rows with the real result).
    @pl.when(p < 2)
    def _():
        out_ref[...] = jnp.zeros_like(out_ref)


# ------------------------------- parameter preparation ---------------------------------------


def prepare_params(params, *, dot_dtype=jnp.float32):
    """One-time conversion of the module parameters into the kernel's HBM layout.

    params = (w1, b1, g1, be1, w2, b2, g2, be2, w3, b3) with Linear weights stored
    pre-transposed as (in, out).  b1/b2 are accepted but never shipped to the kernel (they
    cancel under train-mode BN).  At realistic sizes use dot_dtype=jnp.bfloat16: the MXU is
    bf16-native and bf16 weights halve weight HBM/VMEM traffic (BN/LeakyReLU stay f32).
    """
    w1, _b1, g1, be1, w2, _b2, g2, be2, w3, b3 = params
    d_in, d1 = w1.shape
    d2 = w2.shape[1]
    lanes = _round_up(max(d1, d2, 128), 128)

    def row(v):
        v = jnp.asarray(v, jnp.float32).reshape(1, -1)
        return jnp.pad(v, ((0, 0), (0, lanes - v.shape[1])))

    packed = jnp.concatenate(
        [row(g1), row(be1), row(g2), row(be2), row(b3), row(w3)], axis=0)
    return dict(
        w1=jnp.asarray(w1, dot_dtype),
        w2=jnp.asarray(w2, dot_dtype),
        packed=packed,
        dims=(d_in, d1, d2),
        dot_dtype=dot_dtype,
    )


# ------------------------------------ forward wrapper ----------------------------------------


def _vmem_limit_bytes():
    # Derive the VMEM budget from the actual chip (64 MiB/TC on v7x, 128 MiB on v5e/v6e)
    # instead of hardcoding a v7x number; leave headroom for compiler-internal scratch.
    try:
        cap = int(pltpu.get_tpu_info().vmem_capacity_bytes)
    except Exception:
        cap = 64 << 20          # conservative fallback = v7x per-core VMEM
    return int(min(cap * 3 // 4, 100 << 20))


def _default_tile_batch(batch, d_in, d1, d2, x_itemsize, w_itemsize, vmem_limit):
    # Weights + packed params are fetched once and stay resident; the streaming cost per
    # batch row is the double-buffered x tile, f32 activation temporaries and the tiny output.
    weight_bytes = w_itemsize * (d_in * d1 + d1 * d2) + 4 * 6 * max(d1, d2, 128)
    per_row = 2 * d_in * x_itemsize + 4 * (2 * d1 + 2 * d2) + 2 * 4
    budget = max(vmem_limit // 2 - weight_bytes, 64 * per_row)
    tile = min(budget // per_row, 2048, _round_up(batch, 8))
    return max(8, (int(tile) // 8) * 8)


def mlp_forward_prepared(x, prep, *, tile_batch=None):
    """Forward pass with already-prepared (kernel-layout) parameters."""
    d_in, d1, d2 = prep["dims"]
    w1, w2, packed = prep["w1"], prep["w2"], prep["packed"]
    dot_dtype = prep["dot_dtype"]
    batch = x.shape[0]
    assert x.shape[1] == d_in

    vmem_limit = _vmem_limit_bytes()
    if tile_batch is None:
        tile_batch = _default_tile_batch(batch, d_in, d1, d2,
                                         jnp.dtype(x.dtype).itemsize,
                                         jnp.dtype(dot_dtype).itemsize, vmem_limit)
    tile_batch = max(8, (int(tile_batch) // 8) * 8)

    padded_batch = _round_up(batch, tile_batch)
    if padded_batch != batch:
        # Zero padding keeps layer-1 statistics exact (bias elided); deeper layers are
        # protected by in-kernel row masking.
        x = jnp.pad(x, ((0, padded_batch - batch), (0, 0)))
    n_tiles = padded_batch // tile_batch

    kernel = functools.partial(
        _mlp_kernel, d1=d1, d2=d2, n_valid=batch, tile_b=tile_batch,
        dot_dtype=dot_dtype, needs_mask=(padded_batch != batch))

    wbytes = jnp.dtype(dot_dtype).itemsize
    cost = pl.CostEstimate(
        # Phases 1/2 recompute earlier matmuls instead of spilling activations to HBM.
        flops=2 * padded_batch * (3 * d_in * d1 + 2 * d1 * d2 + d2)
              + 12 * padded_batch * (d1 + d2),
        transcendentals=d1 + d2,
        bytes_accessed=int(NUM_PHASES * x.size * jnp.dtype(x.dtype).itemsize
                           + wbytes * (w1.size + w2.size)
                           + 4 * packed.size + 4 * padded_batch),
    )

    out = pl.pallas_call(
        kernel,
        out_shape=jax.ShapeDtypeStruct((padded_batch, 1), jnp.float32),
        grid_spec=pltpu.PrefetchScalarGridSpec(
            num_scalar_prefetch=0,
            grid=(NUM_PHASES, n_tiles),
            in_specs=[
                # x: streamed batch tile, re-read once per phase (auto double-buffered).
                pl.BlockSpec((tile_batch, d_in), lambda p, t: (t, 0)),
                # Weights + packed per-feature params: constant block index -> DMA'd once,
                # VMEM-resident across all grid steps.
                pl.BlockSpec((d_in, d1), lambda p, t: (0, 0)),
                pl.BlockSpec((d1, d2), lambda p, t: (0, 0)),
                pl.BlockSpec(packed.shape, lambda p, t: (0, 0)),
            ],
            out_specs=pl.BlockSpec((tile_batch, 1), lambda p, t: (t, 0)),
            scratch_shapes=[
                pltpu.VMEM((2, d1), jnp.float32),   # BN1 [sum; sum_sq] -> [scale; shift]
                pltpu.VMEM((2, d2), jnp.float32),   # BN2 [sum; sum_sq] -> [scale; shift]
            ],
        ),
        # Both axes "arbitrary": phases are strictly ordered and batch tiles accumulate into
        # shared VMEM scratch (see TODO about v7x core-parallel BN partials).
        compiler_params=pltpu.CompilerParams(
            dimension_semantics=("arbitrary", "arbitrary"),
            vmem_limit_bytes=vmem_limit,
        ),
        cost_estimate=cost,
    )(x, w1, w2, packed)
    return out[:batch]


def mlp_forward(x, params, *, dot_dtype=jnp.float32, tile_batch=None):
    """Convenience wrapper (prepares params per call; hoist prepare_params() when looping)."""
    return mlp_forward_prepared(x, prepare_params(params, dot_dtype=dot_dtype),
                                tile_batch=tile_batch)


# -------------------------------------- reference / demo -------------------------------------


def init_params(key, input_dim, dims):
    """Deterministic init matching the PyTorch module shapes.

    Linear: weight (in, out) ~ U(-1/sqrt(in), 1/sqrt(in)) (stored pre-transposed),
            bias (1, out) same bound.  BatchNorm1d: gamma=1, beta=0.
    """
    params = []
    d_in = input_dim
    keys = jax.random.split(key, 2 * (len(dims) + 1))
    ki = 0
    for d_out in dims:
        bound = 1.0 / jnp.sqrt(jnp.float32(d_in))
        w = jax.random.uniform(keys[ki], (d_in, d_out), jnp.float32, -bound, bound)
        b = jax.random.uniform(keys[ki + 1], (1, d_out), jnp.float32, -bound, bound)
        ki += 2
        g = jnp.ones((1, d_out), jnp.float32)
        be = jnp.zeros((1, d_out), jnp.float32)
        params += [w, b, g, be]
        d_in = d_out
    bound = 1.0 / jnp.sqrt(jnp.float32(d_in))
    w = jax.random.uniform(keys[ki], (d_in, 1), jnp.float32, -bound, bound)
    b = jax.random.uniform(keys[ki + 1], (1, 1), jnp.float32, -bound, bound)
    params += [w, b]
    return tuple(params)


def mlp_reference(x, params):
    """Pure-JAX reference mirroring the PyTorch module (includes the Linear biases)."""
    w1, b1, g1, be1, w2, b2, g2, be2, w3, b3 = params

    def blk(h, w, b, g, be):
        h = h @ w + b
        mean = jnp.mean(h, axis=0, keepdims=True)
        var = jnp.mean((h - mean) ** 2, axis=0, keepdims=True)
        h = (h - mean) / jnp.sqrt(var + BN_EPS)
        h = h * g + be
        return jnp.where(h > 0, h, LEAKY_SLOPE * h)

    h = blk(x, w1, b1, g1, be1)
    h = blk(h, w2, b2, g2, be2)
    return h @ w3 + b3


if __name__ == "__main__":
    key = jax.random.PRNGKey(0)
    kx, kp = jax.random.split(key)

    # Small demo shapes.  At realistic sizes pick hidden dims as multiples of 256 (v6e/v7x
    # MXU tiles; 128 suffices on v5e), batch tiles of several hundred rows, and bf16 dots.
    batch, input_dim = 30, 32          # batch not a tile multiple -> exercises row masking
    dims = [32, 16]                    # hidden dims; output_layer=True -> final Linear(*, 1)

    x = jax.random.normal(kx, (batch, input_dim), jnp.float32)
    params = init_params(kp, input_dim, dims)
    ref = mlp_reference(x, params)

    # f32 MXU path (tight comparison against the f32 reference); tile_batch=8 forces a
    # multi-tile grid (4 batch tiles x 3 phases) so the pipelined cross-tile BN path runs.
    prep_f32 = prepare_params(params, dot_dtype=jnp.float32)
    out = jax.block_until_ready(mlp_forward_prepared(x, prep_f32, tile_batch=8))
    assert out.shape == (batch, 1)
    assert jnp.allclose(out, ref, atol=1e-4, rtol=1e-4)

    # bf16 MXU path (recommended at realistic sizes): bf16 operands, f32 accumulate, f32 BN.
    # Looser tolerance because BN statistics see bf16-rounded matmul outputs.
    prep_bf16 = prepare_params(params, dot_dtype=jnp.bfloat16)
    out16 = jax.block_until_ready(mlp_forward_prepared(x, prep_bf16, tile_batch=8))
    assert out16.shape == (batch, 1)
    assert bool(jnp.all(jnp.isfinite(out16)))
    assert jnp.allclose(out16, ref, atol=2e-1)

    print("KERNEL_OK")
</pallas_src>

<mosaic_0001>
module attributes {stable_mosaic.version = 11 : i64} {
  func.func @_mlp_kernel(%arg0: i32, %arg1: i32, %arg2: memref<8x32xf32, #tpu.memory_space<vmem>>, %arg3: memref<32x32xf32, #tpu.memory_space<vmem>>, %arg4: memref<32x16xf32, #tpu.memory_space<vmem>>, %arg5: memref<6x128xf32, #tpu.memory_space<vmem>>, %arg6: memref<8x1xf32, #tpu.memory_space<vmem>>, %arg7: memref<2x32xf32, #tpu.memory_space<vmem>>, %arg8: memref<2x16xf32, #tpu.memory_space<vmem>>) attributes {dimension_semantics = [#tpu.dimension_semantics<arbitrary>, #tpu.dimension_semantics<arbitrary>], iteration_bounds = array<i64: 3, 4>, scalar_prefetch = 0 : i64, scratch_operands = 2 : i64, tpu.core_type = #tpu.core_type<tc>, window_params = [{transform_indices = @transform_0, window_bounds = array<i64: 8, 32>}, {pipeline_mode = #tpu.pipeline_mode<synchronous>, transform_indices = @transform_1, window_bounds = array<i64: 32, 32>}, {pipeline_mode = #tpu.pipeline_mode<synchronous>, transform_indices = @transform_2, window_bounds = array<i64: 32, 16>}, {pipeline_mode = #tpu.pipeline_mode<synchronous>, transform_indices = @transform_3, window_bounds = array<i64: 6, 128>}, {transform_indices = @transform_4, window_bounds = array<i64: 8, 1>}]} {
    %c0_i32 = arith.constant 0 : i32
    %0 = arith.cmpi eq, %arg0, %c0_i32 : i32
    %c0_i32_0 = arith.constant 0 : i32
    %1 = arith.cmpi eq, %arg1, %c0_i32_0 : i32
    %2 = arith.andi %0, %1 : i1
    %3 = arith.extui %2 : i1 to i32
    %c0_i32_1 = arith.constant 0 : i32
    %4 = arith.cmpi ne, %3, %c0_i32_1 : i32
    scf.if %4 {
      %cst_15 = arith.constant 0.000000e+00 : f32
      %27 = vector.broadcast %cst_15 : f32 to vector<2x32xf32>
      %c0 = arith.constant 0 : index
      %c0_16 = arith.constant 0 : index
      %28 = vector.load %arg7[%c0, %c0_16] : memref<2x32xf32, #tpu.memory_space<vmem>>, vector<2x32xf32>
      tpu.vector_store %arg7[%c0, %c0_16], %27 {strides = array<i32>} : memref<2x32xf32, #tpu.memory_space<vmem>>, vector<2x32xf32>,
    } else {
    }
    %c1_i32 = arith.constant 1 : i32
    %5 = arith.cmpi eq, %arg0, %c1_i32 : i32
    %c0_i32_2 = arith.constant 0 : i32
    %6 = arith.cmpi eq, %arg1, %c0_i32_2 : i32
    %7 = arith.andi %5, %6 : i1
    %8 = arith.extui %7 : i1 to i32
    %cst = arith.constant 0.0333333351 : f32
    %c0_i32_3 = arith.constant 0 : i32
    %9 = arith.cmpi ne, %8, %c0_i32_3 : i32
    scf.if %9 {
      %c0 = arith.constant 0 : index
      %c0_15 = arith.constant 0 : index
      %27 = vector.load %arg5[%c0, %c0_15] : memref<6x128xf32, #tpu.memory_space<vmem>>, vector<1x32xf32>
      %c1 = arith.constant 1 : index
      %c0_16 = arith.constant 0 : index
      %28 = vector.load %arg5[%c1, %c0_16] : memref<6x128xf32, #tpu.memory_space<vmem>>, vector<1x32xf32>
      %c0_17 = arith.constant 0 : index
      %c0_18 = arith.constant 0 : index
      %29 = vector.load %arg7[%c0_17, %c0_18] : memref<2x32xf32, #tpu.memory_space<vmem>>, vector<2x32xf32>
      %30 = vector.extract_strided_slice %29 {offsets = [0, 0], sizes = [1, 32], strides = [1, 1]} : vector<2x32xf32> to vector<1x32xf32>
      %31 = vector.broadcast %cst : f32 to vector<1x32xf32>
      %32 = arith.mulf %30, %31 : vector<1x32xf32>
      %33 = vector.extract_strided_slice %29 {offsets = [1, 0], sizes = [1, 32], strides = [1, 1]} : vector<2x32xf32> to vector<1x32xf32>
      %34 = vector.broadcast %cst : f32 to vector<1x32xf32>
      %35 = arith.mulf %33, %34 : vector<1x32xf32>
      %36 = arith.mulf %32, %32 : vector<1x32xf32>
      %37 = arith.subf %35, %36 : vector<1x32xf32>
      %cst_19 = arith.constant 0.000000e+00 : f32
      %38 = vector.broadcast %cst_19 : f32 to vector<1x32xf32>
      %39 = arith.maximumf %37, %38 : vector<1x32xf32>
      %cst_20 = arith.constant 9.99999974E-6 : f32
      %40 = vector.broadcast %cst_20 : f32 to vector<1x32xf32>
      %41 = arith.addf %39, %40 : vector<1x32xf32>
      %42 = math.rsqrt %41 : vector<1x32xf32>
      %43 = arith.mulf %27, %42 : vector<1x32xf32>
      %44 = arith.mulf %32, %43 : vector<1x32xf32>
      %45 = arith.subf %28, %44 : vector<1x32xf32>
      %46 = tpu.concatenate %43, %45 in 0 : vector<1x32xf32>, vector<1x32xf32> -> vector<2x32xf32>
      %c0_21 = arith.constant 0 : index
      %c0_22 = arith.constant 0 : index
      %47 = vector.load %arg7[%c0_21, %c0_22] : memref<2x32xf32, #tpu.memory_space<vmem>>, vector<2x32xf32>
      tpu.vector_store %arg7[%c0_21, %c0_22], %46 {strides = array<i32>} : memref<2x32xf32, #tpu.memory_space<vmem>>, vector<2x32xf32>,
      %cst_23 = arith.constant 0.000000e+00 : f32
      %48 = vector.broadcast %cst_23 : f32 to vector<2x16xf32>
      %c0_24 = arith.constant 0 : index
      %c0_25 = arith.constant 0 : index
      %49 = vector.load %arg8[%c0_24, %c0_25] : memref<2x16xf32, #tpu.memory_space<vmem>>, vector<2x16xf32>
      tpu.vector_store %arg8[%c0_24, %c0_25], %48 {strides = array<i32>} : memref<2x16xf32, #tpu.memory_space<vmem>>, vector<2x16xf32>,
    } else {
    }
    %c2_i32 = arith.constant 2 : i32
    %10 = arith.cmpi eq, %arg0, %c2_i32 : i32
    %c0_i32_4 = arith.constant 0 : i32
    %11 = arith.cmpi eq, %arg1, %c0_i32_4 : i32
    %12 = arith.andi %10, %11 : i1
    %13 = arith.extui %12 : i1 to i32
    %cst_5 = arith.constant 0.0333333351 : f32
    %c0_i32_6 = arith.constant 0 : i32
    %14 = arith.cmpi ne, %13, %c0_i32_6 : i32
    scf.if %14 {
      %c2 = arith.constant 2 : index
      %c0 = arith.constant 0 : index
      %27 = vector.load %arg5[%c2, %c0] : memref<6x128xf32, #tpu.memory_space<vmem>>, vector<1x16xf32>
      %c3 = arith.constant 3 : index
      %c0_15 = arith.constant 0 : index
      %28 = vector.load %arg5[%c3, %c0_15] : memref<6x128xf32, #tpu.memory_space<vmem>>, vector<1x16xf32>
      %c0_16 = arith.constant 0 : index
      %c0_17 = arith.constant 0 : index
      %29 = vector.load %arg8[%c0_16, %c0_17] : memref<2x16xf32, #tpu.memory_space<vmem>>, vector<2x16xf32>
      %30 = vector.extract_strided_slice %29 {offsets = [0, 0], sizes = [1, 16], strides = [1, 1]} : vector<2x16xf32> to vector<1x16xf32>
      %31 = vector.broadcast %cst_5 : f32 to vector<1x16xf32>
      %32 = arith.mulf %30, %31 : vector<1x16xf32>
      %33 = vector.extract_strided_slice %29 {offsets = [1, 0], sizes = [1, 16], strides = [1, 1]} : vector<2x16xf32> to vector<1x16xf32>
      %34 = vector.broadcast %cst_5 : f32 to vector<1x16xf32>
      %35 = arith.mulf %33, %34 : vector<1x16xf32>
      %36 = arith.mulf %32, %32 : vector<1x16xf32>
      %37 = arith.subf %35, %36 : vector<1x16xf32>
      %cst_18 = arith.constant 0.000000e+00 : f32
      %38 = vector.broadcast %cst_18 : f32 to vector<1x16xf32>
      %39 = arith.maximumf %37, %38 : vector<1x16xf32>
      %cst_19 = arith.constant 9.99999974E-6 : f32
      %40 = vector.broadcast %cst_19 : f32 to vector<1x16xf32>
      %41 = arith.addf %39, %40 : vector<1x16xf32>
      %42 = math.rsqrt %41 : vector<1x16xf32>
      %43 = arith.mulf %27, %42 : vector<1x16xf32>
      %44 = arith.mulf %32, %43 : vector<1x16xf32>
      %45 = arith.subf %28, %44 : vector<1x16xf32>
      %46 = tpu.concatenate %43, %45 in 0 : vector<1x16xf32>, vector<1x16xf32> -> vector<2x16xf32>
      %c0_20 = arith.constant 0 : index
      %c0_21 = arith.constant 0 : index
      %47 = vector.load %arg8[%c0_20, %c0_21] : memref<2x16xf32, #tpu.memory_space<vmem>>, vector<2x16xf32>
      tpu.vector_store %arg8[%c0_20, %c0_21], %46 {strides = array<i32>} : memref<2x16xf32, #tpu.memory_space<vmem>>, vector<2x16xf32>,
    } else {
    }
    %c0_i32_7 = arith.constant 0 : i32
    %15 = arith.cmpi eq, %arg0, %c0_i32_7 : i32
    %16 = arith.extui %15 : i1 to i32
    %c0_i32_8 = arith.constant 0 : i32
    %17 = arith.cmpi ne, %16, %c0_i32_8 : i32
    scf.if %17 {
      %c0 = arith.constant 0 : index
      %c0_15 = arith.constant 0 : index
      %27 = vector.load %arg2[%c0, %c0_15] : memref<8x32xf32, #tpu.memory_space<vmem>>, vector<8x32xf32>
      %c0_16 = arith.constant 0 : index
      %c0_17 = arith.constant 0 : index
      %28 = vector.load %arg3[%c0_16, %c0_17] : memref<32x32xf32, #tpu.memory_space<vmem>>, vector<32x32xf32>
      %cst_18 = arith.constant dense<0.000000e+00> : vector<8x32xf32>
      %29 = tpu.matmul %27, %28, %cst_18 {dimension_numbers = #tpu.dot_dimension_numbers<[1], [0], [0], [1], [0, 0, 1, 1], [], []>} : vector<8x32xf32>, vector<32x32xf32>, vector<8x32xf32> -> vector<8x32xf32>
      %c0_19 = arith.constant 0 : index
      %c0_20 = arith.constant 0 : index
      %30 = vector.load %arg7[%c0_19, %c0_20] : memref<2x32xf32, #tpu.memory_space<vmem>>, vector<2x32xf32>
      %cst_21 = arith.constant dense<0.000000e+00> : vector<32xf32>
      %31 = vector.multi_reduction <add>, %29, %cst_21 [0] : vector<8x32xf32> to vector<32xf32>
      %32 = vector.shape_cast %31 : vector<32xf32> to vector<1x32xf32>
      %33 = arith.mulf %29, %29 : vector<8x32xf32>
      %cst_22 = arith.constant dense<0.000000e+00> : vector<32xf32>
      %34 = vector.multi_reduction <add>, %33, %cst_22 [0] : vector<8x32xf32> to vector<32xf32>
      %35 = vector.shape_cast %34 : vector<32xf32> to vector<1x32xf32>
      %36 = tpu.concatenate %32, %35 in 0 : vector<1x32xf32>, vector<1x32xf32> -> vector<2x32xf32>
      %37 = arith.addf %30, %36 : vector<2x32xf32>
      %c0_23 = arith.constant 0 : index
      %c0_24 = arith.constant 0 : index
      %38 = vector.load %arg7[%c0_23, %c0_24] : memref<2x32xf32, #tpu.memory_space<vmem>>, vector<2x32xf32>
      tpu.vector_store %arg7[%c0_23, %c0_24], %37 {strides = array<i32>} : memref<2x32xf32, #tpu.memory_space<vmem>>, vector<2x32xf32>,
    } else {
    }
    %c1_i32_9 = arith.constant 1 : i32
    %18 = arith.cmpi eq, %arg0, %c1_i32_9 : i32
    %19 = arith.extui %18 : i1 to i32
    %c0_i32_10 = arith.constant 0 : i32
    %20 = arith.cmpi ne, %19, %c0_i32_10 : i32
    scf.if %20 {
      %c0 = arith.constant 0 : index
      %c0_15 = arith.constant 0 : index
      %27 = vector.load %arg2[%c0, %c0_15] : memref<8x32xf32, #tpu.memory_space<vmem>>, vector<8x32xf32>
      %c0_16 = arith.constant 0 : index
      %c0_17 = arith.constant 0 : index
      %28 = vector.load %arg3[%c0_16, %c0_17] : memref<32x32xf32, #tpu.memory_space<vmem>>, vector<32x32xf32>
      %cst_18 = arith.constant dense<0.000000e+00> : vector<8x32xf32>
      %29 = tpu.matmul %27, %28, %cst_18 {dimension_numbers = #tpu.dot_dimension_numbers<[1], [0], [0], [1], [0, 0, 1, 1], [], []>} : vector<8x32xf32>, vector<32x32xf32>, vector<8x32xf32> -> vector<8x32xf32>
      %c0_19 = arith.constant 0 : index
      %c0_20 = arith.constant 0 : index
      %30 = vector.load %arg7[%c0_19, %c0_20] : memref<2x32xf32, #tpu.memory_space<vmem>>, vector<1x32xf32>
      %31 = vector.broadcast %30 : vector<1x32xf32> to vector<8x32xf32>
      %32 = arith.mulf %29, %31 : vector<8x32xf32>
      %c1 = arith.constant 1 : index
      %c0_21 = arith.constant 0 : index
      %33 = vector.load %arg7[%c1, %c0_21] : memref<2x32xf32, #tpu.memory_space<vmem>>, vector<1x32xf32>
      %34 = vector.broadcast %33 : vector<1x32xf32> to vector<8x32xf32>
      %35 = arith.addf %32, %34 : vector<8x32xf32>
      %cst_22 = arith.constant 0.000000e+00 : f32
      %36 = vector.broadcast %cst_22 : f32 to vector<8x32xf32>
      %37 = arith.cmpf ogt, %35, %36 : vector<8x32xf32>
      %cst_23 = arith.constant 0.00999999977 : f32
      %38 = vector.broadcast %cst_23 : f32 to vector<8x32xf32>
      %39 = arith.mulf %38, %35 : vector<8x32xf32>
      %40 = arith.select %37, %35, %39 : vector<8x32xi1>, vector<8x32xf32>
      %c8_i32 = arith.constant 8 : i32
      %41 = arith.muli %arg1, %c8_i32 : i32
      %42 = tpu.iota {dimensions = array<i32: 0>} : vector<8x1xi32>
      %43 = vector.broadcast %41 : i32 to vector<8x1xi32>
      %44 = arith.addi %43, %42 : vector<8x1xi32>
      %c30_i32 = arith.constant 30 : i32
      %45 = vector.broadcast %c30_i32 : i32 to vector<8x1xi32>
      %46 = arith.cmpi slt, %44, %45 : vector<8x1xi32>
      %cst_24 = arith.constant 0.000000e+00 : f32
      %47 = vector.shape_cast %46 : vector<8x1xi1> to vector<8x1xi1>
      %48 = vector.broadcast %47 : vector<8x1xi1> to vector<8x32xi1>
      %49 = vector.broadcast %cst_24 : f32 to vector<8x32xf32>
      %50 = arith.select %48, %40, %49 : vector<8x32xi1>, vector<8x32xf32>
      %c0_25 = arith.constant 0 : index
      %c0_26 = arith.constant 0 : index
      %51 = vector.load %arg4[%c0_25, %c0_26] : memref<32x16xf32, #tpu.memory_space<vmem>>, vector<32x16xf32>
      %cst_27 = arith.constant dense<0.000000e+00> : vector<8x16xf32>
      %52 = tpu.matmul %50, %51, %cst_27 {dimension_numbers = #tpu.dot_dimension_numbers<[1], [0], [0], [1], [0, 0, 1, 1], [], []>} : vector<8x32xf32>, vector<32x16xf32>, vector<8x16xf32> -> vector<8x16xf32>
      %c0_28 = arith.constant 0 : index
      %c0_29 = arith.constant 0 : index
      %53 = vector.load %arg8[%c0_28, %c0_29] : memref<2x16xf32, #tpu.memory_space<vmem>>, vector<2x16xf32>
      %cst_30 = arith.constant dense<0.000000e+00> : vector<16xf32>
      %54 = vector.multi_reduction <add>, %52, %cst_30 [0] : vector<8x16xf32> to vector<16xf32>
      %55 = vector.shape_cast %54 : vector<16xf32> to vector<1x16xf32>
      %56 = arith.mulf %52, %52 : vector<8x16xf32>
      %cst_31 = arith.constant dense<0.000000e+00> : vector<16xf32>
      %57 = vector.multi_reduction <add>, %56, %cst_31 [0] : vector<8x16xf32> to vector<16xf32>
      %58 = vector.shape_cast %57 : vector<16xf32> to vector<1x16xf32>
      %59 = tpu.concatenate %55, %58 in 0 : vector<1x16xf32>, vector<1x16xf32> -> vector<2x16xf32>
      %60 = arith.addf %53, %59 : vector<2x16xf32>
      %c0_32 = arith.constant 0 : index
      %c0_33 = arith.constant 0 : index
      %61 = vector.load %arg8[%c0_32, %c0_33] : memref<2x16xf32, #tpu.memory_space<vmem>>, vector<2x16xf32>
      tpu.vector_store %arg8[%c0_32, %c0_33], %60 {strides = array<i32>} : memref<2x16xf32, #tpu.memory_space<vmem>>, vector<2x16xf32>,
    } else {
    }
    %c2_i32_11 = arith.constant 2 : i32
    %21 = arith.cmpi eq, %arg0, %c2_i32_11 : i32
    %22 = arith.extui %21 : i1 to i32
    %c0_i32_12 = arith.constant 0 : i32
    %23 = arith.cmpi ne, %22, %c0_i32_12 : i32
    scf.if %23 {
      %c0 = arith.constant 0 : index
      %c0_15 = arith.constant 0 : index
      %27 = vector.load %arg2[%c0, %c0_15] : memref<8x32xf32, #tpu.memory_space<vmem>>, vector<8x32xf32>
      %c0_16 = arith.constant 0 : index
      %c0_17 = arith.constant 0 : index
      %28 = vector.load %arg3[%c0_16, %c0_17] : memref<32x32xf32, #tpu.memory_space<vmem>>, vector<32x32xf32>
      %cst_18 = arith.constant dense<0.000000e+00> : vector<8x32xf32>
      %29 = tpu.matmul %27, %28, %cst_18 {dimension_numbers = #tpu.dot_dimension_numbers<[1], [0], [0], [1], [0, 0, 1, 1], [], []>} : vector<8x32xf32>, vector<32x32xf32>, vector<8x32xf32> -> vector<8x32xf32>
      %c0_19 = arith.constant 0 : index
      %c0_20 = arith.constant 0 : index
      %30 = vector.load %arg7[%c0_19, %c0_20] : memref<2x32xf32, #tpu.memory_space<vmem>>, vector<1x32xf32>
      %31 = vector.broadcast %30 : vector<1x32xf32> to vector<8x32xf32>
      %32 = arith.mulf %29, %31 : vector<8x32xf32>
      %c1 = arith.constant 1 : index
      %c0_21 = arith.constant 0 : index
      %33 = vector.load %arg7[%c1, %c0_21] : memref<2x32xf32, #tpu.memory_space<vmem>>, vector<1x32xf32>
      %34 = vector.broadcast %33 : vector<1x32xf32> to vector<8x32xf32>
      %35 = arith.addf %32, %34 : vector<8x32xf32>
      %cst_22 = arith.constant 0.000000e+00 : f32
      %36 = vector.broadcast %cst_22 : f32 to vector<8x32xf32>
      %37 = arith.cmpf ogt, %35, %36 : vector<8x32xf32>
      %cst_23 = arith.constant 0.00999999977 : f32
      %38 = vector.broadcast %cst_23 : f32 to vector<8x32xf32>
      %39 = arith.mulf %38, %35 : vector<8x32xf32>
      %40 = arith.select %37, %35, %39 : vector<8x32xi1>, vector<8x32xf32>
      %c8_i32 = arith.constant 8 : i32
      %41 = arith.muli %arg1, %c8_i32 : i32
      %42 = tpu.iota {dimensions = array<i32: 0>} : vector<8x1xi32>
      %43 = vector.broadcast %41 : i32 to vector<8x1xi32>
      %44 = arith.addi %43, %42 : vector<8x1xi32>
      %c30_i32 = arith.constant 30 : i32
      %45 = vector.broadcast %c30_i32 : i32 to vector<8x1xi32>
      %46 = arith.cmpi slt, %44, %45 : vector<8x1xi32>
      %cst_24 = arith.constant 0.000000e+00 : f32
      %47 = vector.shape_cast %46 : vector<8x1xi1> to vector<8x1xi1>
      %48 = vector.broadcast %47 : vector<8x1xi1> to vector<8x32xi1>
      %49 = vector.broadcast %cst_24 : f32 to vector<8x32xf32>
      %50 = arith.select %48, %40, %49 : vector<8x32xi1>, vector<8x32xf32>
      %c0_25 = arith.constant 0 : index
      %c0_26 = arith.constant 0 : index
      %51 = vector.load %arg4[%c0_25, %c0_26] : memref<32x16xf32, #tpu.memory_space<vmem>>, vector<32x16xf32>
      %cst_27 = arith.constant dense<0.000000e+00> : vector<8x16xf32>
      %52 = tpu.matmul %50, %51, %cst_27 {dimension_numbers = #tpu.dot_dimension_numbers<[1], [0], [0], [1], [0, 0, 1, 1], [], []>} : vector<8x32xf32>, vector<32x16xf32>, vector<8x16xf32> -> vector<8x16xf32>
      %c0_28 = arith.constant 0 : index
      %c0_29 = arith.constant 0 : index
      %53 = vector.load %arg8[%c0_28, %c0_29] : memref<2x16xf32, #tpu.memory_space<vmem>>, vector<1x16xf32>
      %54 = vector.broadcast %53 : vector<1x16xf32> to vector<8x16xf32>
      %55 = arith.mulf %52, %54 : vector<8x16xf32>
      %c1_30 = arith.constant 1 : index
      %c0_31 = arith.constant 0 : index
      %56 = vector.load %arg8[%c1_30, %c0_31] : memref<2x16xf32, #tpu.memory_space<vmem>>, vector<1x16xf32>
      %57 = vector.broadcast %56 : vector<1x16xf32> to vector<8x16xf32>
      %58 = arith.addf %55, %57 : vector<8x16xf32>
      %cst_32 = arith.constant 0.000000e+00 : f32
      %59 = vector.broadcast %cst_32 : f32 to vector<8x16xf32>
      %60 = arith.cmpf ogt, %58, %59 : vector<8x16xf32>
      %cst_33 = arith.constant 0.00999999977 : f32
      %61 = vector.broadcast %cst_33 : f32 to vector<8x16xf32>
      %62 = arith.mulf %61, %58 : vector<8x16xf32>
      %63 = arith.select %60, %58, %62 : vector<8x16xi1>, vector<8x16xf32>
      %c5 = arith.constant 5 : index
      %c0_34 = arith.constant 0 : index
      %64 = vector.load %arg5[%c5, %c0_34] : memref<6x128xf32, #tpu.memory_space<vmem>>, vector<1x16xf32>
      %65 = vector.broadcast %64 : vector<1x16xf32> to vector<8x16xf32>
      %66 = arith.mulf %63, %65 : vector<8x16xf32>
      %cst_35 = arith.constant dense<0.000000e+00> : vector<8xf32>
      %67 = vector.multi_reduction <add>, %66, %cst_35 [1] : vector<8x16xf32> to vector<8xf32>
      %68 = vector.shape_cast %67 : vector<8xf32> to vector<8x1xf32>
      %c4 = arith.constant 4 : index
      %c0_36 = arith.constant 0 : index
      %69 = vector.load %arg5[%c4, %c0_36] : memref<6x128xf32, #tpu.memory_space<vmem>>, vector<1x1xf32>
      %70 = vector.broadcast %69 : vector<1x1xf32> to vector<8x1xf32>
      %71 = arith.addf %68, %70 : vector<8x1xf32>
      %c0_37 = arith.constant 0 : index
      %c0_38 = arith.constant 0 : index
      %72 = vector.load %arg6[%c0_37, %c0_38] : memref<8x1xf32, #tpu.memory_space<vmem>>, vector<8x1xf32>
      tpu.vector_store %arg6[%c0_37, %c0_38], %71 {strides = array<i32>} : memref<8x1xf32, #tpu.memory_space<vmem>>, vector<8x1xf32>,
    } else {
    }
    %c2_i32_13 = arith.constant 2 : i32
    %24 = arith.cmpi slt, %arg0, %c2_i32_13 : i32
    %25 = arith.extui %24 : i1 to i32
    %c0_i32_14 = arith.constant 0 : i32
    %26 = arith.cmpi ne, %25, %c0_i32_14 : i32
    scf.if %26 {
      %cst_15 = arith.constant 0.000000e+00 : f32
      %27 = vector.broadcast %cst_15 : f32 to vector<8x1xf32>
      %c0 = arith.constant 0 : index
      %c0_16 = arith.constant 0 : index
      %28 = vector.load %arg6[%c0, %c0_16] : memref<8x1xf32, #tpu.memory_space<vmem>>, vector<8x1xf32>
      tpu.vector_store %arg6[%c0, %c0_16], %27 {strides = array<i32>} : memref<8x1xf32, #tpu.memory_space<vmem>>, vector<8x1xf32>,
    } else {
    }
    return
  }
  func.func @transform_0(%arg0: i32, %arg1: i32) -> (i32, i32) {
    %c0_i32 = arith.constant 0 : i32
    %c0_i32_0 = arith.constant 0 : i32
    return %arg1, %c0_i32 : i32, i32
  }
  func.func @transform_1(%arg0: i32, %arg1: i32) -> (i32, i32) {
    %c0_i32 = arith.constant 0 : i32
    %c0_i32_0 = arith.constant 0 : i32
    %c0_i32_1 = arith.constant 0 : i32
    return %c0_i32, %c0_i32_0 : i32, i32
  }
  func.func @transform_2(%arg0: i32, %arg1: i32) -> (i32, i32) {
    %c0_i32 = arith.constant 0 : i32
    %c0_i32_0 = arith.constant 0 : i32
    %c0_i32_1 = arith.constant 0 : i32
    return %c0_i32, %c0_i32_0 : i32, i32
  }
  func.func @transform_3(%arg0: i32, %arg1: i32) -> (i32, i32) {
    %c0_i32 = arith.constant 0 : i32
    %c0_i32_0 = arith.constant 0 : i32
    %c0_i32_1 = arith.constant 0 : i32
    return %c0_i32, %c0_i32_0 : i32, i32
  }
  func.func @transform_4(%arg0: i32, %arg1: i32) -> (i32, i32) {
    %c0_i32 = arith.constant 0 : i32
    %c0_i32_0 = arith.constant 0 : i32
    return %arg1, %c0_i32 : i32, i32
  }
}

</mosaic_0001>

<llo_original>
// kernel: tpu_custom_call.1
$region0: #{tpu_custom_call.1}
  #allocation0 [shape = 'u32[]', space=smem, size = 0x4, offset = 0x4, fixed_abs, tag = 'smem constant byte address 0x4 - core index']
  #allocation1 [shape = 'u32[144,128]{1,0:T(1,128)}', space=vmem, size = 0x12000, scoped, tag = 'internal scratch']
  #allocation2 [shape = 'f32[2,32]{1,0:T(2,128)}', space=vmem, size = 0x400, scoped, tag = 'scratch operand']
  #allocation3 [shape = 'f32[2,16]{1,0:T(2,128)}', space=vmem, size = 0x400, scoped, tag = 'scratch operand']
  %s0 = inlined_call_operand.vmem [shape: f32[32,32], index: 0, kind: input, shape index: {}]
  %s1 = inlined_call_operand.hbm [shape: f32[32,32], index: 1, kind: input, shape index: {}]
  %s2 = inlined_call_operand.vmem [shape: f32[32,16], index: 2, kind: input, shape index: {}]
  %s3 = inlined_call_operand.vmem [shape: f32[6,128], index: 3, kind: input, shape index: {}]
  %s4 = inlined_call_operand.vmem [shape: f32[32,1], index: 4, kind: output, shape index: {}]
  %s5 = sld [smem:[#allocation0]]
  $region81: #{tpu_custom_call.1} parent=0
    _
  %s7 = ssub.s32 1, %s5
  %s8 = scalar_select 0, %s7, %s5
  $region1: #{tpu_custom_call.1} parent=0
    #allocation4 [shape = 'u8[16384]{0}', space=vmem, size = 0x4000, scoped, tag = 'input window, operand 1, single buffered']
    #allocation5 [shape = 's32[2]{0}', space=sflag, size = 0x8, scoped, tag = 'scoped memory for tpu_custom_call.1']
    %9 = vsyncpa [#allocation5], 0
    loop: start=0, step=1, limit=14
    $region2: #{tpu_custom_call.1} parent=1 // loop_pre_header
      _
    $region3: #{tpu_custom_call.1} parent=1 // loop_header
      %s11 = sphi 0, %s15
      %p12 = scmp.ge.s32.totalorder %s11, 14
      %s18 = sphi 0, %s30
      %s19 = sphi 0, %s26
      %s20 = sphi 0, %s18
      %s21 = sphi 0, %s19
      %s22 = sphi 0, %s20
      %s23 = sphi 0, %s21
      %s33 = sphi 0, %s35
      %s36 = sphi 0, %s33
      %s37 = sphi 0, %s36
      %s53 = sphi 0, %s37
      %s57 = sphi 0, %s57
      %s59 = sphi 0, %s57
      %s60 = sphi 0, %s59
      %s74 = sphi 0, %s60
      %s78 = sphi 0, %s78
      %s80 = sphi 0, %s78
      %s81 = sphi 0, %s80
      %s95 = sphi 0, %s81
      %s99 = sphi 0, %s99
      %s101 = sphi 0, %s99
      %s102 = sphi 0, %s101
      %s116 = sphi 0, %s102
      %s122 = sphi 0, %s124
      %s125 = sphi 0, %s122
      %s126 = sphi 0, %s125
      %s142 = sphi 0, %s126
    $region4: #{tpu_custom_call.1} parent=1 // loop_header_branch
      %14 = sbr.rel (%p12) target = $region8
    $region5: #{tpu_custom_call.1} parent=1 // loop_body
      %s16 = ssub.s32 %s11, 1
      %s17 = ssub.s32 %s11, 2
      %s24 = sadd.s32 1, %s19
      %p25 = scmp.ge.s32.totalorder %s24, 4
      %s26 = scalar_select %p25, 0, %s24
      %s27 = sadd.s32 1, %s18
      %s28 = scalar_select %p25, %s27, %s18
      %p29 = scmp.ge.s32.totalorder %s28, 3
      %s30 = scalar_select %p29, 0, %s28
      %s31 = ssub.s32 %s19, %s26
      %p32 = scmp.eq.s32.totalorder %s31, 0
      %s34 = sadd.s32 %s33, 1
      %s35 = scalar_select %p32, %s33, %s34
      %p38 = pneg %p32
      %p39 = scmp.eq.s32.totalorder %s11, 11
      %p40 = por %p38, %p39
      %p41 = scmp.ne.s32.totalorder %s33, %s36
      %p42 = scmp.eq.s32.totalorder %s11, 0
      %p43 = por %p41, %p42
      %p44 = scmp.ne.s32.totalorder %s33, %s36
      %p45 = scmp.eq.s32.totalorder %s16, 11
      %p46 = por %p44, %p45
      %p47 = scmp.ne.s32.totalorder %s36, %s37
      %p48 = scmp.eq.s32.totalorder %s16, 0
      %p49 = por %p47, %p48
      %p50 = scmp.ne.s32.totalorder %s36, %s37
      %p51 = scmp.eq.s32.totalorder %s17, 11
      %p52 = por %p50, %p51
      %p54 = scmp.ne.s32.totalorder %s37, %s53
      %p55 = scmp.eq.s32.totalorder %s17, 0
      %p56 = por %p54, %p55
      %s58 = sadd.s32 %s57, 1
      %p61 = scmp.eq.s32.totalorder %s11, 11
      %p62 = scmp.ne.s32.totalorder %s57, %s59
      %p63 = scmp.eq.s32.totalorder %s11, 0
      %p64 = por %p62, %p63
      %p65 = scmp.ne.s32.totalorder %s57, %s59
      %p66 = scmp.eq.s32.totalorder %s16, 11
      %p67 = por %p65, %p66
      %p68 = scmp.ne.s32.totalorder %s59, %s60
      %p69 = scmp.eq.s32.totalorder %s16, 0
      %p70 = por %p68, %p69
      %p71 = scmp.ne.s32.totalorder %s59, %s60
      %p72 = scmp.eq.s32.totalorder %s17, 11
      %p73 = por %p71, %p72
      %p75 = scmp.ne.s32.totalorder %s60, %s74
      %p76 = scmp.eq.s32.totalorder %s17, 0
      %p77 = por %p75, %p76
      %s79 = sadd.s32 %s78, 1
      %p82 = scmp.eq.s32.totalorder %s11, 11
      %p83 = scmp.ne.s32.totalorder %s78, %s80
      %p84 = scmp.eq.s32.totalorder %s11, 0
      %p85 = por %p83, %p84
      %p86 = scmp.ne.s32.totalorder %s78, %s80
      %p87 = scmp.eq.s32.totalorder %s16, 11
      %p88 = por %p86, %p87
      %p89 = scmp.ne.s32.totalorder %s80, %s81
      %p90 = scmp.eq.s32.totalorder %s16, 0
      %p91 = por %p89, %p90
      %p92 = scmp.ne.s32.totalorder %s80, %s81
      %p93 = scmp.eq.s32.totalorder %s17, 11
      %p94 = por %p92, %p93
      %p96 = scmp.ne.s32.totalorder %s81, %s95
      %p97 = scmp.eq.s32.totalorder %s17, 0
      %p98 = por %p96, %p97
      %s100 = sadd.s32 %s99, 1
      %p103 = scmp.eq.s32.totalorder %s11, 11
      %p104 = scmp.ne.s32.totalorder %s99, %s101
      %p105 = scmp.eq.s32.totalorder %s11, 0
      %p106 = por %p104, %p105
      %p107 = scmp.ne.s32.totalorder %s99, %s101
      %p108 = scmp.eq.s32.totalorder %s16, 11
      %p109 = por %p107, %p108
      %p110 = scmp.ne.s32.totalorder %s101, %s102
      %p111 = scmp.eq.s32.totalorder %s16, 0
      %p112 = por %p110, %p111
      %p113 = scmp.ne.s32.totalorder %s101, %s102
      %p114 = scmp.eq.s32.totalorder %s17, 11
      %p115 = por %p113, %p114
      %p117 = scmp.ne.s32.totalorder %s102, %s116
      %p118 = scmp.eq.s32.totalorder %s17, 0
      %p119 = por %p117, %p118
      %s120 = ssub.s32 %s19, %s26
      %p121 = scmp.eq.s32.totalorder %s120, 0
      %s123 = sadd.s32 %s122, 1
      %s124 = scalar_select %p121, %s122, %s123
      %p127 = pneg %p121
      %p128 = scmp.eq.s32.totalorder %s11, 11
      %p129 = por %p127, %p128
      %p130 = scmp.ne.s32.totalorder %s122, %s125
      %p131 = scmp.eq.s32.totalorder %s11, 0
      %p132 = por %p130, %p131
      %p133 = scmp.ne.s32.totalorder %s122, %s125
      %p134 = scmp.eq.s32.totalorder %s16, 11
      %p135 = por %p133, %p134
      %p136 = scmp.ne.s32.totalorder %s125, %s126
      %p137 = scmp.eq.s32.totalorder %s16, 0
      %p138 = por %p136, %p137
      %p139 = scmp.ne.s32.totalorder %s125, %s126
      %p140 = scmp.eq.s32.totalorder %s17, 11
      %p141 = por %p139, %p140
      %p143 = scmp.ne.s32.totalorder %s126, %s142
      %p144 = scmp.eq.s32.totalorder %s17, 0
      %p145 = por %p143, %p144
      %p146 = scmp.le.s32.totalorder 1, %s11
      %p147 = scmp.lt.s32.totalorder %s11, 13
      %p148 = pnand %p146, %p147
      %p149 = pneg %p148
      // Predicated region
      $region9: #{tpu_custom_call.1} parent=5 // pred_check
        _
      $region10: #{tpu_custom_call.1} parent=5 // pred_check_branch
        %151 = sbr.rel (%p148) target = $region12
      $region11: #{tpu_custom_call.1} parent=5 // pred_region
        %s152 = ssub.s32 %s11, 1
        // Predicated region
        $region13: #{tpu_custom_call.1} parent=11 // pred_check
          %p153 = pneg %p70
        $region14: #{tpu_custom_call.1} parent=11 // pred_check_branch
          %155 = sbr.rel (%p153) target = $region16
        $region15: #{tpu_custom_call.1} parent=11 // pred_region
          %s157 = ssub.s32 512, 512
          %158 = vsyncadd [#allocation5], %s157
          %s159 = sshll.u32 [#allocation4], 4
          %s160 = int_to_ptr.vmem [resolvable:$true] %s159
          %165 = dma.hbm_to_vmem [thread:$0]  %s1, 512, %s160, [#allocation5], 128, 128, 8
        $region16: #{tpu_custom_call.1} parent=11 // pred_fallthru
          _
        // Predicated region
        $region17: #{tpu_custom_call.1} parent=11 // pred_check
          %p166 = pneg %p91
        $region18: #{tpu_custom_call.1} parent=11 // pred_check_branch
          %168 = sbr.rel (%p166) target = $region20
        $region19: #{tpu_custom_call.1} parent=11 // pred_region
          _
        $region20: #{tpu_custom_call.1} parent=11 // pred_fallthru
          _
        // Predicated region
        $region21: #{tpu_custom_call.1} parent=11 // pred_check
          %p169 = pneg %p112
        $region22: #{tpu_custom_call.1} parent=11 // pred_check_branch
          %171 = sbr.rel (%p169) target = $region24
        $region23: #{tpu_custom_call.1} parent=11 // pred_region
          _
        $region24: #{tpu_custom_call.1} parent=11 // pred_fallthru
          _
      $region12: #{tpu_custom_call.1} parent=5 // pred_fallthru
        _
      %p172 = scmp.lt.s32.totalorder %s11, 12
      // Predicated region
      $region25: #{tpu_custom_call.1} parent=5 // pred_check
        %p173 = pneg %p172
      $region26: #{tpu_custom_call.1} parent=5 // pred_check_branch
        %175 = sbr.rel (%p173) target = $region28
      $region27: #{tpu_custom_call.1} parent=5 // pred_region
        // Predicated region
        $region29: #{tpu_custom_call.1} parent=27 // pred_check
          %p176 = pneg %p43
        $region30: #{tpu_custom_call.1} parent=27 // pred_check_branch
          %178 = sbr.rel (%p176) target = $region32
        $region31: #{tpu_custom_call.1} parent=27 // pred_region
          %p179 = scmp.lt.s32.totalorder %s19, 3
          %s180 = scalar_select %p179, %s19, 3
          %s181 = smul.addr %s180, 8
          %s182 = scalar_lea.vmem %s0, %s181
        $region32: #{tpu_custom_call.1} parent=27 // pred_fallthru
          _
      $region28: #{tpu_custom_call.1} parent=5 // pred_fallthru
        _
      %p183 = scmp.le.s32.totalorder 1, %s11
      %p184 = scmp.lt.s32.totalorder %s11, 13
      %p185 = pnand %p183, %p184
      %p186 = pneg %p185
      // Predicated region
      $region33: #{tpu_custom_call.1} parent=5 // pred_check
        _
      $region34: #{tpu_custom_call.1} parent=5 // pred_check_branch
        %188 = sbr.rel (%p185) target = $region36
      $region35: #{tpu_custom_call.1} parent=5 // pred_region
        %s189 = ssub.s32 %s11, 1
        // Predicated region
        $region37: #{tpu_custom_call.1} parent=35 // pred_check
          %p190 = pneg %p70
        $region38: #{tpu_custom_call.1} parent=35 // pred_check_branch
          %192 = sbr.rel (%p190) target = $region40
        $region39: #{tpu_custom_call.1} parent=35 // pred_region
          %193 = dma.done [#allocation5], 512
        $region40: #{tpu_custom_call.1} parent=35 // pred_fallthru
          _
        %p194 = scmp.lt.s32.totalorder %s21, 3
        %s195 = scalar_select %p194, %s21, 3
        %s196 = smul.addr %s195, 8
        %s197 = scalar_lea.vmem %s0, %s196
        %p198 = pneg %p49
        %p199 = pneg %p46
        %p200 = pneg %p70
        %p201 = pneg %p67
        %p202 = pneg %p91
        %p203 = pneg %p88
        %p204 = pneg %p112
        %p205 = pneg %p109
        %p206 = pneg %p138
        %p207 = pneg %p135
        %p208 = scmp.lt.s32.totalorder %s21, 3
        %s209 = scalar_select %p208, %s21, 3
        %s210 = smul.addr %s209, 8
        %s211 = scalar_lea.vmem %s4, %s210
        %p212 = scmp.lt.s32.totalorder %s21, 3
        %s213 = scalar_select %p212, %s21, 3
        %s214 = smul.addr %s213, 8
        %s215 = scalar_lea.vmem %s0, %s214
        %p216 = scmp.lt.s32.totalorder %s21, 3
        %s217 = scalar_select %p216, %s21, 3
        %s218 = smul.addr %s217, 8
        %s219 = scalar_lea.vmem %s4, %s218
        %p220 = scmp.eq.s32.totalorder %s20, 0
        %p221 = scmp.eq.s32.totalorder %s21, 0
        %p222 = pnand %p220, %p221
        %p223 = pneg %p222
        // Predicated region
        $region41: #{tpu_custom_call.1} parent=35 // pred_check
          _
        $region42: #{tpu_custom_call.1} parent=35 // pred_check_branch
          %225 = sbr.rel (%p222) target = $region44
        $region43: #{tpu_custom_call.1} parent=35 // pred_region
          %vm226 = vcmask 254976
          %227 = vst.msk [vmem:[#allocation2] sm:$0x3] %vm226, 0.0
        $region44: #{tpu_custom_call.1} parent=35 // pred_fallthru
          _
        %p228 = scmp.eq.s32.totalorder %s20, 1
        %p229 = pnand %p228, %p221
        %p230 = pneg %p229
        // Predicated region
        $region45: #{tpu_custom_call.1} parent=35 // pred_check
          _
        $region46: #{tpu_custom_call.1} parent=35 // pred_check_branch
          %232 = sbr.rel (%p229) target = $region48
        $region47: #{tpu_custom_call.1} parent=35 // pred_region
          %v233 = vld [vmem:[%s3] sm:$0x1]
          %v234 = vld [vmem:[%s3 + $0x1] sm:$0x1]
          %v235 = vld [vmem:[#allocation2] sm:$0x3]
          %v236 = vmul.f32 %v235, 0.033333335
          %v237 = vmul.f32 %v236, %v236
          %v239 = vrot.slane %v237, 7
          %v241 = vsub.f32 %v236, %v239
          %v242 = vmax.f32 %v241, 0.0
          %v243 = vadd.f32 %v242, 1e-05
          %v244 = vrsqrt.pop %v243
          %v246 = vrot.slane %v244, 1
          %v248 = vmul.f32 %v233, %v246
          %v249 = vmul.f32 %v236, %v248
          %v250 = vsub.f32 %v234, %v249
          %v252 = vrot.slane %v250, 7
          %vm254 = vcmask 1040384
          %v255 = vsel %vm254, %v248, %v252
          %vm256 = vcmask 254976
          %257 = vst.msk [vmem:[#allocation2] sm:$0x3] %vm256, %v255
          %vm258 = vcmask 123904
          %259 = vst.msk [vmem:[#allocation3] sm:$0x3] %vm258, 0.0
        $region48: #{tpu_custom_call.1} parent=35 // pred_fallthru
          _
        %p260 = scmp.eq.s32.totalorder %s20, 2
        %p261 = pnand %p260, %p221
        %p262 = pneg %p261
        // Predicated region
        $region49: #{tpu_custom_call.1} parent=35 // pred_check
          _
        $region50: #{tpu_custom_call.1} parent=35 // pred_check_branch
          %264 = sbr.rel (%p261) target = $region52
        $region51: #{tpu_custom_call.1} parent=35 // pred_region
          %v265 = vld [vmem:[%s3 + $0x2] sm:$0x1]
          %v266 = vld [vmem:[%s3 + $0x3] sm:$0x1]
          %v267 = vld [vmem:[#allocation3] sm:$0x3]
          %v268 = vmul.f32 %v267, 0.033333335
          %v269 = vmul.f32 %v268, %v268
          %v271 = vrot.slane %v269, 7
          %v273 = vsub.f32 %v268, %v271
          %v274 = vmax.f32 %v273, 0.0
          %v275 = vadd.f32 %v274, 1e-05
          %v276 = vrsqrt.pop %v275
          %v278 = vrot.slane %v276, 1
          %v280 = vmul.f32 %v265, %v278
          %v281 = vmul.f32 %v268, %v280
          %v282 = vsub.f32 %v266, %v281
          %v284 = vrot.slane %v282, 7
          %vm286 = vcmask 1040384
          %v287 = vsel %vm286, %v280, %v284
          %vm288 = vcmask 123904
          %289 = vst.msk [vmem:[#allocation3] sm:$0x3] %vm288, %v287
        $region52: #{tpu_custom_call.1} parent=35 // pred_fallthru
          _
        // Predicated region
        $region53: #{tpu_custom_call.1} parent=35 // pred_check
          %p290 = pneg %p220
        $region54: #{tpu_custom_call.1} parent=35 // pred_check_branch
          %292 = sbr.rel (%p290) target = $region56
        $region55: #{tpu_custom_call.1} parent=35 // pred_region
          %v293 = vld [vmem:[%s215] sm:$0xff]
          %v294 = vld [vmem:[#allocation4] sm:$0xff]
          %v295 = vld [vmem:[#allocation4 + $0x8] sm:$0xff]
          %v296 = vld [vmem:[#allocation4 + $0x10] sm:$0xff]
          %v297 = vld [vmem:[#allocation4 + $0x18] sm:$0xff]
          %vm298 = vcmask 261120
          %v300 = vsel %vm298, %v293, 0
          %302 = vmatprep.subr.mxu0 0.0
          %303 = vmatpush1.msra.mxu0 0.0
          %304 = vmatprep.subr.mxu0 0.0
          %305 = vmatpush1.msra.mxu0 0.0
          %306 = vmatprep.subr.mxu0 0.0
          %307 = vmatpush1.msra.mxu0 0.0
          %308 = vmatprep.subr.mxu0 0.0
          %309 = vmatpush1.msra.mxu0 0.0
          %310 = vmatprep.subr.mxu0 0.0
          %311 = vmatpush1.msra.mxu0 0.0
          %312 = vmatprep.subr.mxu0 0.0
          %313 = vmatpush1.msra.mxu0 0.0
          %314 = vmatprep.subr.mxu0 0.0
          %315 = vmatpush1.msra.mxu0 0.0
          %316 = vmatprep.subr.mxu0 0.0
          %317 = vmatpush1.msra.mxu0 0.0
          %318 = vmatprep.subr.mxu0 0.0
          %319 = vmatpush1.msra.mxu0 0.0
          %320 = vmatprep.subr.mxu0 0.0
          %321 = vmatpush1.msra.mxu0 0.0
          %322 = vmatprep.subr.mxu0 0.0
          %323 = vmatpush1.msra.mxu0 0.0
          %324 = vmatprep.subr.mxu0 0.0
          %325 = vmatpush1.msra.mxu0 0.0
          %326 = vmatprep.subr.mxu0 0.0
          %327 = vmatpush1.msra.mxu0 %v297
          %328 = vmatprep.subr.mxu0 0.0
          %329 = vmatpush1.msra.mxu0 %v296
          %330 = vmatprep.subr.mxu0 0.0
          %331 = vmatpush1.msra.mxu0 %v295
          %332 = vmatprep.subr.mxu0 0.0
          %333 = vmatpush1.msra.mxu0 %v294
          %334 = vmatprep.subr.mxu0 0.0
          %335 = vmatpush2.msra.mxu0 0.0
          %336 = vmatprep.subr.mxu0 0.0
          %337 = vmatpush2.msra.mxu0 0.0
          %338 = vmatprep.subr.mxu0 0.0
          %339 = vmatpush2.msra.mxu0 0.0
          %340 = vmatprep.subr.mxu0 0.0
          %341 = vmatpush2.msra.mxu0 0.0
          %342 = vmatprep.subr.mxu0 0.0
          %343 = vmatpush2.msra.mxu0 0.0
          %344 = vmatprep.subr.mxu0 0.0
          %345 = vmatpush2.msra.mxu0 0.0
          %346 = vmatprep.subr.mxu0 0.0
          %347 = vmatpush2.msra.mxu0 0.0
          %348 = vmatprep.subr.mxu0 0.0
          %349 = vmatpush2.msra.mxu0 0.0
          %350 = vmatprep.subr.mxu0 0.0
          %351 = vmatpush2.msra.mxu0 0.0
          %352 = vmatprep.subr.mxu0 0.0
          %353 = vmatpush2.msra.mxu0 0.0
          %354 = vmatprep.subr.mxu0 0.0
          %355 = vmatpush2.msra.mxu0 0.0
          %356 = vmatprep.subr.mxu0 0.0
          %357 = vmatpush2.msra.mxu0 0.0
          %358 = vmatprep.subr.mxu0 0.0
          %359 = vmatpush2.msra.mxu0 0.0
          %360 = vmatprep.subr.mxu0 0.0
          %361 = vmatpush2.msra.mxu0 0.0
          %362 = vmatprep.subr.mxu0 0.0
          %363 = vmatpush2.msra.mxu0 0.0
          %364 = vmatprep.subr.mxu0 0.0
          %365 = vmatpush2.msra.mxu0 0.0
          %366 = vmatprep.mubr.f32.mxu0 0.0
          %367 = vmatmul.mubr.f32.gmra.mxu0 %v300
          %v368 = vpop.f32.mrf.mxu0
          %v369 = vadd.f32 0.0, %v368
          %v370 = vpop.f32.mrf.mxu0
          %371 = vdwg.mxu0
          %v372 = vld [vmem:[#allocation2] sm:$0x3]
          %v373 = vsel %vm298, %v369, 0.0
          %v374 = vrot.slane %v373, 4
          %v375 = vadd.f32 %v373, %v374
          %v376 = vrot.slane %v375, 2
          %v377 = vadd.f32 %v375, %v376
          %v378 = vrot.slane %v377, 1
          %v379 = vadd.f32 %v377, %v378
          %v380 = vmul.f32 %v369, %v369
          %v381 = vsel %vm298, %v380, 0.0
          %v382 = vrot.slane %v381, 4
          %v383 = vadd.f32 %v381, %v382
          %v384 = vrot.slane %v383, 2
          %v385 = vadd.f32 %v383, %v384
          %v386 = vrot.slane %v385, 1
          %v387 = vadd.f32 %v385, %v386
          %vm388 = vcmask 1040384
          %v389 = vsel %vm388, %v379, %v387
          %v390 = vadd.f32 %v372, %v389
          %vm391 = vcmask 254976
          %392 = vst.msk [vmem:[#allocation2] sm:$0x3] %vm391, %v390
        $region56: #{tpu_custom_call.1} parent=35 // pred_fallthru
          _
        // Predicated region
        $region57: #{tpu_custom_call.1} parent=35 // pred_check
          %p393 = pneg %p228
        $region58: #{tpu_custom_call.1} parent=35 // pred_check_branch
          %395 = sbr.rel (%p393) target = $region60
        $region59: #{tpu_custom_call.1} parent=35 // pred_region
          %v396 = vld [vmem:[%s215] sm:$0xff]
          %v397 = vld [vmem:[#allocation4] sm:$0xff]
          %v398 = vld [vmem:[#allocation4 + $0x8] sm:$0xff]
          %v399 = vld [vmem:[#allocation4 + $0x10] sm:$0xff]
          %v400 = vld [vmem:[#allocation4 + $0x18] sm:$0xff]
          %vm401 = vcmask 261120
          %v403 = vsel %vm401, %v396, 0
          %405 = vmatprep.subr.mxu0 0.0
          %406 = vmatpush1.msra.mxu0 0.0
          %407 = vmatprep.subr.mxu0 0.0
          %408 = vmatpush1.msra.mxu0 0.0
          %409 = vmatprep.subr.mxu0 0.0
          %410 = vmatpush1.msra.mxu0 0.0
          %411 = vmatprep.subr.mxu0 0.0
          %412 = vmatpush1.msra.mxu0 0.0
          %413 = vmatprep.subr.mxu0 0.0
          %414 = vmatpush1.msra.mxu0 0.0
          %415 = vmatprep.subr.mxu0 0.0
          %416 = vmatpush1.msra.mxu0 0.0
          %417 = vmatprep.subr.mxu0 0.0
          %418 = vmatpush1.msra.mxu0 0.0
          %419 = vmatprep.subr.mxu0 0.0
          %420 = vmatpush1.msra.mxu0 0.0
          %421 = vmatprep.subr.mxu0 0.0
          %422 = vmatpush1.msra.mxu0 0.0
          %423 = vmatprep.subr.mxu0 0.0
          %424 = vmatpush1.msra.mxu0 0.0
          %425 = vmatprep.subr.mxu0 0.0
          %426 = vmatpush1.msra.mxu0 0.0
          %427 = vmatprep.subr.mxu0 0.0
          %428 = vmatpush1.msra.mxu0 0.0
          %429 = vmatprep.subr.mxu0 0.0
          %430 = vmatpush1.msra.mxu0 %v400
          %431 = vmatprep.subr.mxu0 0.0
          %432 = vmatpush1.msra.mxu0 %v399
          %433 = vmatprep.subr.mxu0 0.0
          %434 = vmatpush1.msra.mxu0 %v398
          %435 = vmatprep.subr.mxu0 0.0
          %436 = vmatpush1.msra.mxu0 %v397
          %437 = vmatprep.subr.mxu0 0.0
          %438 = vmatpush2.msra.mxu0 0.0
          %439 = vmatprep.subr.mxu0 0.0
          %440 = vmatpush2.msra.mxu0 0.0
          %441 = vmatprep.subr.mxu0 0.0
          %442 = vmatpush2.msra.mxu0 0.0
          %443 = vmatprep.subr.mxu0 0.0
          %444 = vmatpush2.msra.mxu0 0.0
          %445 = vmatprep.subr.mxu0 0.0
          %446 = vmatpush2.msra.mxu0 0.0
          %447 = vmatprep.subr.mxu0 0.0
          %448 = vmatpush2.msra.mxu0 0.0
          %449 = vmatprep.subr.mxu0 0.0
          %450 = vmatpush2.msra.mxu0 0.0
          %451 = vmatprep.subr.mxu0 0.0
          %452 = vmatpush2.msra.mxu0 0.0
          %453 = vmatprep.subr.mxu0 0.0
          %454 = vmatpush2.msra.mxu0 0.0
          %455 = vmatprep.subr.mxu0 0.0
          %456 = vmatpush2.msra.mxu0 0.0
          %457 = vmatprep.subr.mxu0 0.0
          %458 = vmatpush2.msra.mxu0 0.0
          %459 = vmatprep.subr.mxu0 0.0
          %460 = vmatpush2.msra.mxu0 0.0
          %461 = vmatprep.subr.mxu0 0.0
          %462 = vmatpush2.msra.mxu0 0.0
          %463 = vmatprep.subr.mxu0 0.0
          %464 = vmatpush2.msra.mxu0 0.0
          %465 = vmatprep.subr.mxu0 0.0
          %466 = vmatpush2.msra.mxu0 0.0
          %467 = vmatprep.subr.mxu0 0.0
          %468 = vmatpush2.msra.mxu0 0.0
          %469 = vmatprep.mubr.f32.mxu0 0.0
          %470 = vmatmul.mubr.f32.gmra.mxu0 %v403
          %v471 = vpop.f32.mrf.mxu0
          %v472 = vadd.f32 0.0, %v471
          %v473 = vpop.f32.mrf.mxu0
          %474 = vdwg.mxu0
          %v475 = vld [vmem:[#allocation2] sm:$0x1]
          %v476 = vlaneseq
          %v477 = vshrl.u32 %v476, 7
          %v478 = vsub.s32 0, %v477
          %v479 = vrot.slane %v475, %v478
          %v480 = vmul.f32 %v472, %v479
          %v481 = vld [vmem:[#allocation2 + $0x1] sm:$0x1]
          %v482 = vlaneseq
          %v483 = vshrl.u32 %v482, 7
          %v484 = vsub.s32 0, %v483
          %v485 = vrot.slane %v481, %v484
          %v486 = vadd.f32 %v480, %v485
          %vm487 = vcmp.gt.f32.partialorder %v486, 0.0
          %v488 = vmul.f32 %v486, 0.01
          %v489 = vsel %vm487, %v486, %v488
          %s490 = smul.u32 %s21, 8
          %v491 = vlaneseq
          %v492 = vshrl.u32 %v491, 7
          %v493 = vstv %s490
          %v494 = vadd.s32 %v493, %v492
          %vm495 = vcmp.lt.s32.totalorder %v494, 30
          %v496 = vsel %vm495, 1, 0
          %vm497 = vcmp.eq.s32.totalorder %v496, 1
          %v498 = vsel %vm497, %v489, 0.0
          %v499 = vld [vmem:[%s2] sm:$0xff]
          %v500 = vld [vmem:[%s2 + $0x8] sm:$0xff]
          %v501 = vld [vmem:[%s2 + $0x10] sm:$0xff]
          %v502 = vld [vmem:[%s2 + $0x18] sm:$0xff]
          %v504 = vsel %vm401, %v498, 0
          %506 = vmatprep.subr.mxu0 0.0
          %507 = vmatpush1.msra.mxu0 0.0
          %508 = vmatprep.subr.mxu0 0.0
          %509 = vmatpush1.msra.mxu0 0.0
          %510 = vmatprep.subr.mxu0 0.0
          %511 = vmatpush1.msra.mxu0 0.0
          %512 = vmatprep.subr.mxu0 0.0
          %513 = vmatpush1.msra.mxu0 0.0
          %514 = vmatprep.subr.mxu0 0.0
          %515 = vmatpush1.msra.mxu0 0.0
          %516 = vmatprep.subr.mxu0 0.0
          %517 = vmatpush1.msra.mxu0 0.0
          %518 = vmatprep.subr.mxu0 0.0
          %519 = vmatpush1.msra.mxu0 0.0
          %520 = vmatprep.subr.mxu0 0.0
          %521 = vmatpush1.msra.mxu0 0.0
          %522 = vmatprep.subr.mxu0 0.0
          %523 = vmatpush1.msra.mxu0 0.0
          %524 = vmatprep.subr.mxu0 0.0
          %525 = vmatpush1.msra.mxu0 0.0
          %526 = vmatprep.subr.mxu0 0.0
          %527 = vmatpush1.msra.mxu0 0.0
          %528 = vmatprep.subr.mxu0 0.0
          %529 = vmatpush1.msra.mxu0 0.0
          %530 = vmatprep.subr.mxu0 0.0
          %531 = vmatpush1.msra.mxu0 %v502
          %532 = vmatprep.subr.mxu0 0.0
          %533 = vmatpush1.msra.mxu0 %v501
          %534 = vmatprep.subr.mxu0 0.0
          %535 = vmatpush1.msra.mxu0 %v500
          %536 = vmatprep.subr.mxu0 0.0
          %537 = vmatpush1.msra.mxu0 %v499
          %538 = vmatprep.subr.mxu0 0.0
          %539 = vmatpush2.msra.mxu0 0.0
          %540 = vmatprep.subr.mxu0 0.0
          %541 = vmatpush2.msra.mxu0 0.0
          %542 = vmatprep.subr.mxu0 0.0
          %543 = vmatpush2.msra.mxu0 0.0
          %544 = vmatprep.subr.mxu0 0.0
          %545 = vmatpush2.msra.mxu0 0.0
          %546 = vmatprep.subr.mxu0 0.0
          %547 = vmatpush2.msra.mxu0 0.0
          %548 = vmatprep.subr.mxu0 0.0
          %549 = vmatpush2.msra.mxu0 0.0
          %550 = vmatprep.subr.mxu0 0.0
          %551 = vmatpush2.msra.mxu0 0.0
          %552 = vmatprep.subr.mxu0 0.0
          %553 = vmatpush2.msra.mxu0 0.0
          %554 = vmatprep.subr.mxu0 0.0
          %555 = vmatpush2.msra.mxu0 0.0
          %556 = vmatprep.subr.mxu0 0.0
          %557 = vmatpush2.msra.mxu0 0.0
          %558 = vmatprep.subr.mxu0 0.0
          %559 = vmatpush2.msra.mxu0 0.0
          %560 = vmatprep.subr.mxu0 0.0
          %561 = vmatpush2.msra.mxu0 0.0
          %562 = vmatprep.subr.mxu0 0.0
          %563 = vmatpush2.msra.mxu0 0.0
          %564 = vmatprep.subr.mxu0 0.0
          %565 = vmatpush2.msra.mxu0 0.0
          %566 = vmatprep.subr.mxu0 0.0
          %567 = vmatpush2.msra.mxu0 0.0
          %568 = vmatprep.subr.mxu0 0.0
          %569 = vmatpush2.msra.mxu0 0.0
          %570 = vmatprep.mubr.f32.mxu0 0.0
          %571 = vmatmul.mubr.f32.gmra.mxu0 %v504
          %v572 = vpop.f32.mrf.mxu0
          %v573 = vadd.f32 0.0, %v572
          %v574 = vpop.f32.mrf.mxu0
          %575 = vdwg.mxu0
          %v576 = vld [vmem:[#allocation3] sm:$0x3]
          %vm577 = vcmask 130048
          %v578 = vsel %vm577, %v573, 0.0
          %v579 = vrot.slane %v578, 4
          %v580 = vadd.f32 %v578, %v579
          %v581 = vrot.slane %v580, 2
          %v582 = vadd.f32 %v580, %v581
          %v583 = vrot.slane %v582, 1
          %v584 = vadd.f32 %v582, %v583
          %v585 = vmul.f32 %v573, %v573
          %v586 = vsel %vm577, %v585, 0.0
          %v587 = vrot.slane %v586, 4
          %v588 = vadd.f32 %v586, %v587
          %v589 = vrot.slane %v588, 2
          %v590 = vadd.f32 %v588, %v589
          %v591 = vrot.slane %v590, 1
          %v592 = vadd.f32 %v590, %v591
          %vm593 = vcmask 1040384
          %v594 = vsel %vm593, %v584, %v592
          %v595 = vadd.f32 %v576, %v594
          %vm596 = vcmask 123904
          %597 = vst.msk [vmem:[#allocation3] sm:$0x3] %vm596, %v595
        $region60: #{tpu_custom_call.1} parent=35 // pred_fallthru
          _
        // Predicated region
        $region61: #{tpu_custom_call.1} parent=35 // pred_check
          %p598 = pneg %p260
        $region62: #{tpu_custom_call.1} parent=35 // pred_check_branch
          %600 = sbr.rel (%p598) target = $region64
        $region63: #{tpu_custom_call.1} parent=35 // pred_region
          %v601 = vld [vmem:[%s215] sm:$0xff]
          %v602 = vld [vmem:[#allocation4] sm:$0xff]
          %v603 = vld [vmem:[#allocation4 + $0x8] sm:$0xff]
          %v604 = vld [vmem:[#allocation4 + $0x10] sm:$0xff]
          %v605 = vld [vmem:[#allocation4 + $0x18] sm:$0xff]
          %vm606 = vcmask 261120
          %v608 = vsel %vm606, %v601, 0
          %610 = vmatprep.subr.mxu0 0.0
          %611 = vmatpush1.msra.mxu0 0.0
          %612 = vmatprep.subr.mxu0 0.0
          %613 = vmatpush1.msra.mxu0 0.0
          %614 = vmatprep.subr.mxu0 0.0
          %615 = vmatpush1.msra.mxu0 0.0
          %616 = vmatprep.subr.mxu0 0.0
          %617 = vmatpush1.msra.mxu0 0.0
          %618 = vmatprep.subr.mxu0 0.0
          %619 = vmatpush1.msra.mxu0 0.0
          %620 = vmatprep.subr.mxu0 0.0
          %621 = vmatpush1.msra.mxu0 0.0
          %622 = vmatprep.subr.mxu0 0.0
          %623 = vmatpush1.msra.mxu0 0.0
          %624 = vmatprep.subr.mxu0 0.0
          %625 = vmatpush1.msra.mxu0 0.0
          %626 = vmatprep.subr.mxu0 0.0
          %627 = vmatpush1.msra.mxu0 0.0
          %628 = vmatprep.subr.mxu0 0.0
          %629 = vmatpush1.msra.mxu0 0.0
          %630 = vmatprep.subr.mxu0 0.0
          %631 = vmatpush1.msra.mxu0 0.0
          %632 = vmatprep.subr.mxu0 0.0
          %633 = vmatpush1.msra.mxu0 0.0
          %634 = vmatprep.subr.mxu0 0.0
          %635 = vmatpush1.msra.mxu0 %v605
          %636 = vmatprep.subr.mxu0 0.0
          %637 = vmatpush1.msra.mxu0 %v604
          %638 = vmatprep.subr.mxu0 0.0
          %639 = vmatpush1.msra.mxu0 %v603
          %640 = vmatprep.subr.mxu0 0.0
          %641 = vmatpush1.msra.mxu0 %v602
          %642 = vmatprep.subr.mxu0 0.0
          %643 = vmatpush2.msra.mxu0 0.0
          %644 = vmatprep.subr.mxu0 0.0
          %645 = vmatpush2.msra.mxu0 0.0
          %646 = vmatprep.subr.mxu0 0.0
          %647 = vmatpush2.msra.mxu0 0.0
          %648 = vmatprep.subr.mxu0 0.0
          %649 = vmatpush2.msra.mxu0 0.0
          %650 = vmatprep.subr.mxu0 0.0
          %651 = vmatpush2.msra.mxu0 0.0
          %652 = vmatprep.subr.mxu0 0.0
          %653 = vmatpush2.msra.mxu0 0.0
          %654 = vmatprep.subr.mxu0 0.0
          %655 = vmatpush2.msra.mxu0 0.0
          %656 = vmatprep.subr.mxu0 0.0
          %657 = vmatpush2.msra.mxu0 0.0
          %658 = vmatprep.subr.mxu0 0.0
          %659 = vmatpush2.msra.mxu0 0.0
          %660 = vmatprep.subr.mxu0 0.0
          %661 = vmatpush2.msra.mxu0 0.0
          %662 = vmatprep.subr.mxu0 0.0
          %663 = vmatpush2.msra.mxu0 0.0
          %664 = vmatprep.subr.mxu0 0.0
          %665 = vmatpush2.msra.mxu0 0.0
          %666 = vmatprep.subr.mxu0 0.0
          %667 = vmatpush2.msra.mxu0 0.0
          %668 = vmatprep.subr.mxu0 0.0
          %669 = vmatpush2.msra.mxu0 0.0
          %670 = vmatprep.subr.mxu0 0.0
          %671 = vmatpush2.msra.mxu0 0.0
          %672 = vmatprep.subr.mxu0 0.0
          %673 = vmatpush2.msra.mxu0 0.0
          %674 = vmatprep.mubr.f32.mxu0 0.0
          %675 = vmatmul.mubr.f32.gmra.mxu0 %v608
          %v676 = vpop.f32.mrf.mxu0
          %v677 = vadd.f32 0.0, %v676
          %v678 = vpop.f32.mrf.mxu0
          %679 = vdwg.mxu0
          %v680 = vld [vmem:[#allocation2] sm:$0x1]
          %v681 = vlaneseq
          %v682 = vshrl.u32 %v681, 7
          %v683 = vsub.s32 0, %v682
          %v684 = vrot.slane %v680, %v683
          %v685 = vmul.f32 %v677, %v684
          %v686 = vld [vmem:[#allocation2 + $0x1] sm:$0x1]
          %v687 = vlaneseq
          %v688 = vshrl.u32 %v687, 7
          %v689 = vsub.s32 0, %v688
          %v690 = vrot.slane %v686, %v689
          %v691 = vadd.f32 %v685, %v690
          %vm692 = vcmp.gt.f32.partialorder %v691, 0.0
          %v693 = vmul.f32 %v691, 0.01
          %v694 = vsel %vm692, %v691, %v693
          %s695 = smul.u32 %s21, 8
          %v696 = vlaneseq
          %v697 = vshrl.u32 %v696, 7
          %v698 = vstv %s695
          %v699 = vadd.s32 %v698, %v697
          %vm700 = vcmp.lt.s32.totalorder %v699, 30
          %v701 = vsel %vm700, 1, 0
          %vm702 = vcmp.eq.s32.totalorder %v701, 1
          %v703 = vsel %vm702, %v694, 0.0
          %v704 = vld [vmem:[%s2] sm:$0xff]
          %v705 = vld [vmem:[%s2 + $0x8] sm:$0xff]
          %v706 = vld [vmem:[%s2 + $0x10] sm:$0xff]
          %v707 = vld [vmem:[%s2 + $0x18] sm:$0xff]
          %v709 = vsel %vm606, %v703, 0
          %711 = vmatprep.subr.mxu0 0.0
          %712 = vmatpush1.msra.mxu0 0.0
          %713 = vmatprep.subr.mxu0 0.0
          %714 = vmatpush1.msra.mxu0 0.0
          %715 = vmatprep.subr.mxu0 0.0
          %716 = vmatpush1.msra.mxu0 0.0
          %717 = vmatprep.subr.mxu0 0.0
          %718 = vmatpush1.msra.mxu0 0.0
          %719 = vmatprep.subr.mxu0 0.0
          %720 = vmatpush1.msra.mxu0 0.0
          %721 = vmatprep.subr.mxu0 0.0
          %722 = vmatpush1.msra.mxu0 0.0
          %723 = vmatprep.subr.mxu0 0.0
          %724 = vmatpush1.msra.mxu0 0.0
          %725 = vmatprep.subr.mxu0 0.0
          %726 = vmatpush1.msra.mxu0 0.0
          %727 = vmatprep.subr.mxu0 0.0
          %728 = vmatpush1.msra.mxu0 0.0
          %729 = vmatprep.subr.mxu0 0.0
          %730 = vmatpush1.msra.mxu0 0.0
          %731 = vmatprep.subr.mxu0 0.0
          %732 = vmatpush1.msra.mxu0 0.0
          %733 = vmatprep.subr.mxu0 0.0
          %734 = vmatpush1.msra.mxu0 0.0
          %735 = vmatprep.subr.mxu0 0.0
          %736 = vmatpush1.msra.mxu0 %v707
          %737 = vmatprep.subr.mxu0 0.0
          %738 = vmatpush1.msra.mxu0 %v706
          %739 = vmatprep.subr.mxu0 0.0
          %740 = vmatpush1.msra.mxu0 %v705
          %741 = vmatprep.subr.mxu0 0.0
          %742 = vmatpush1.msra.mxu0 %v704
          %743 = vmatprep.subr.mxu0 0.0
          %744 = vmatpush2.msra.mxu0 0.0
          %745 = vmatprep.subr.mxu0 0.0
          %746 = vmatpush2.msra.mxu0 0.0
          %747 = vmatprep.subr.mxu0 0.0
          %748 = vmatpush2.msra.mxu0 0.0
          %749 = vmatprep.subr.mxu0 0.0
          %750 = vmatpush2.msra.mxu0 0.0
          %751 = vmatprep.subr.mxu0 0.0
          %752 = vmatpush2.msra.mxu0 0.0
          %753 = vmatprep.subr.mxu0 0.0
          %754 = vmatpush2.msra.mxu0 0.0
          %755 = vmatprep.subr.mxu0 0.0
          %756 = vmatpush2.msra.mxu0 0.0
          %757 = vmatprep.subr.mxu0 0.0
          %758 = vmatpush2.msra.mxu0 0.0
          %759 = vmatprep.subr.mxu0 0.0
          %760 = vmatpush2.msra.mxu0 0.0
          %761 = vmatprep.subr.mxu0 0.0
          %762 = vmatpush2.msra.mxu0 0.0
          %763 = vmatprep.subr.mxu0 0.0
          %764 = vmatpush2.msra.mxu0 0.0
          %765 = vmatprep.subr.mxu0 0.0
          %766 = vmatpush2.msra.mxu0 0.0
          %767 = vmatprep.subr.mxu0 0.0
          %768 = vmatpush2.msra.mxu0 0.0
          %769 = vmatprep.subr.mxu0 0.0
          %770 = vmatpush2.msra.mxu0 0.0
          %771 = vmatprep.subr.mxu0 0.0
          %772 = vmatpush2.msra.mxu0 0.0
          %773 = vmatprep.subr.mxu0 0.0
          %774 = vmatpush2.msra.mxu0 0.0
          %775 = vmatprep.mubr.f32.mxu0 0.0
          %776 = vmatmul.mubr.f32.gmra.mxu0 %v709
          %v777 = vpop.f32.mrf.mxu0
          %v778 = vadd.f32 0.0, %v777
          %v779 = vpop.f32.mrf.mxu0
          %780 = vdwg.mxu0
          %v781 = vld [vmem:[#allocation3] sm:$0x1]
          %v782 = vlaneseq
          %v783 = vshrl.u32 %v782, 7
          %v784 = vsub.s32 0, %v783
          %v785 = vrot.slane %v781, %v784
          %v786 = vmul.f32 %v778, %v785
          %v787 = vld [vmem:[#allocation3 + $0x1] sm:$0x1]
          %v788 = vlaneseq
          %v789 = vshrl.u32 %v788, 7
          %v790 = vsub.s32 0, %v789
          %v791 = vrot.slane %v787, %v790
          %v792 = vadd.f32 %v786, %v791
          %vm793 = vcmp.gt.f32.partialorder %v792, 0.0
          %v794 = vmul.f32 %v792, 0.01
          %v795 = vsel %vm793, %v792, %v794
          %v796 = vld [vmem:[%s3 + $0x5] sm:$0x1]
          %v797 = vlaneseq
          %v798 = vshrl.u32 %v797, 7
          %v799 = vsub.s32 0, %v798
          %v800 = vrot.slane %v796, %v799
          %v801 = vmul.f32 %v795, %v800
          %vm802 = vcmask 130048
          %v803 = vsel %vm802, %v801, 0.0
          %804 = vadd.xlane.f32.xlu0 %v803
          %v805 = vpop.xlane.xlu0 %804
          %v806 = vld [vmem:[%s3 + $0x4] sm:$0x1]
          %v807 = vlaneseq
          %v808 = vshrl.u32 %v807, 7
          %v809 = vsub.s32 0, %v808
          %v810 = vrot.slane %v806, %v809
          %v811 = vadd.f32 %v805, %v810
          %vm812 = vcmask 7168
          %813 = vst.msk [vmem:[%s219] sm:$0xff] %vm812, %v811
        $region64: #{tpu_custom_call.1} parent=35 // pred_fallthru
          _
        %p814 = scmp.lt.s32.totalorder %s20, 2
        // Predicated region
        $region65: #{tpu_custom_call.1} parent=35 // pred_check
          %p815 = pneg %p814
        $region66: #{tpu_custom_call.1} parent=35 // pred_check_branch
          %817 = sbr.rel (%p815) target = $region68
        $region67: #{tpu_custom_call.1} parent=35 // pred_region
          %vm818 = vcmask 7168
          %819 = vst.msk [vmem:[%s219] sm:$0xff] %vm818, 0.0
        $region68: #{tpu_custom_call.1} parent=35 // pred_fallthru
          _
        %p820 = scmp.lt.s32.totalorder %s21, 3
        %s821 = scalar_select %p820, %s21, 3
        %s822 = smul.addr %s821, 8
        %s823 = scalar_lea.vmem %s4, %s822
        // Predicated region
        $region69: #{tpu_custom_call.1} parent=35 // pred_check
          %p824 = pneg %p135
        $region70: #{tpu_custom_call.1} parent=35 // pred_check_branch
          %826 = sbr.rel (%p824) target = $region72
        $region71: #{tpu_custom_call.1} parent=35 // pred_region
          _
        $region72: #{tpu_custom_call.1} parent=35 // pred_fallthru
          _
      $region36: #{tpu_custom_call.1} parent=5 // pred_fallthru
        _
      %p827 = scmp.le.s32.totalorder 2, %s11
      // Predicated region
      $region73: #{tpu_custom_call.1} parent=5 // pred_check
        %p828 = pneg %p827
      $region74: #{tpu_custom_call.1} parent=5 // pred_check_branch
        %830 = sbr.rel (%p828) target = $region76
      $region75: #{tpu_custom_call.1} parent=5 // pred_region
        %s831 = ssub.s32 %s11, 2
        // Predicated region
        $region77: #{tpu_custom_call.1} parent=75 // pred_check
          %p832 = pneg %p141
        $region78: #{tpu_custom_call.1} parent=75 // pred_check_branch
          %834 = sbr.rel (%p832) target = $region80
        $region79: #{tpu_custom_call.1} parent=75 // pred_region
          %p835 = scmp.lt.s32.totalorder %s23, 3
          %s836 = scalar_select %p835, %s23, 3
          %s837 = smul.addr %s836, 8
          %s838 = scalar_lea.vmem %s4, %s837
        $region80: #{tpu_custom_call.1} parent=75 // pred_fallthru
          _
      $region76: #{tpu_custom_call.1} parent=5 // pred_fallthru
        _
    $region6: #{tpu_custom_call.1} parent=1 // loop_footer
      %s15 = sadd.s32 1, %s11
    $region7: #{tpu_custom_call.1} parent=1 // loop_footer_branch
      %10 = sbr.rel target = $region3
    $region8: #{tpu_custom_call.1} parent=1 // loop_exit
      _
    %839 = vsyncpa [#allocation5], 1
    %s840 = scalar_lea.sflag [#allocation5], 1
    %841 = vsyncpa %s840, 1

</llo_original>
